<compile_context>
chip_gen: v6e
topology: v6e:2x2x1
jax: 0.10.0
libtpu: 0.0.40
codegen_flags: <defaults>
</compile_context>

<pallas_src>
import functools

import jax
import jax.numpy as jnp
from jax.experimental import pallas as pl
from jax.experimental.pallas import tpu as pltpu


# ----------------------------------------------------------------------------- #
# pltpu.roll sign probe (one tiny kernel, run eagerly once; result baked in statically)
# ----------------------------------------------------------------------------- #
_ROLL_MATCHES_JNP = None


def _roll_matches_jnp():
    """Probe whether pltpu.roll follows jnp.roll's sign convention on this backend.

    Must be called outside any trace (it is called eagerly from the wrapper); the
    boolean is baked into the kernels so either convention yields correct conv taps.
    """
    global _ROLL_MATCHES_JNP
    if _ROLL_MATCHES_JNP is None:
        def k(x_ref, o_ref):
            o_ref[...] = pltpu.roll(x_ref[...], shift=1, axis=1)

        x = jnp.arange(8 * 128, dtype=jnp.float32).reshape(8, 128)
        got = pl.pallas_call(
            k, out_shape=jax.ShapeDtypeStruct((8, 128), jnp.float32))(x)
        _ROLL_MATCHES_JNP = bool(jnp.array_equal(got, jnp.roll(x, 1, axis=1)))
    return _ROLL_MATCHES_JNP


def _lane_roll(x, shift, matches_jnp):
    """jnp.roll(x, shift, axis=-1) semantics via the XLU lane rotate."""
    n = x.shape[-1]
    s = shift % n if matches_jnp else (-shift) % n
    return pltpu.roll(x, shift=s, axis=x.ndim - 1)


# ----------------------------------------------------------------------------- #
# Fused GroupNorm -> swish -> 3x3 conv (im2col) building block.  x: (C, H*W) f32.
# ----------------------------------------------------------------------------- #
def _gn_swish_conv3x3(x, p_ref, g_ref, b_ref, w_ref, col_ref, *, H, W, groups, eps,
                      roll_matches):
    C, HW = x.shape
    inv_n = 1.0 / float(HW * (C // groups))

    # ---- GroupNorm (two-pass variance; avoids E[x^2]-mean^2 cancellation) ----
    csum = jnp.sum(x, axis=1, keepdims=True)                               # (C, 1)
    mean = jnp.dot(p_ref[...], csum, preferred_element_type=jnp.float32) * inv_n
    d = x - mean                                                           # (C, HW)
    dsq = jnp.sum(d * d, axis=1, keepdims=True)                            # (C, 1)
    var = jnp.dot(p_ref[...], dsq, preferred_element_type=jnp.float32) * inv_n
    y = d * (jax.lax.rsqrt(var + eps) * g_ref[...]) + b_ref[...]
    y = y * jax.nn.sigmoid(y)                                              # swish

    # ---- build im2col in VMEM: 9 rolled + boundary-masked taps ----
    lane = jax.lax.broadcasted_iota(jnp.int32, (1, HW), 1)
    row_id, col_id = lane // W, lane % W
    for dy in range(3):
        for dx in range(3):
            off = (dy - 1) * W + (dx - 1)
            tap = y if off == 0 else _lane_roll(y, -off, roll_matches)
            r, c = row_id + (dy - 1), col_id + (dx - 1)
            ok = (r >= 0) & (r < H) & (c >= 0) & (c < W)
            col_ref[pl.ds((dy * 3 + dx) * C, C), :] = jnp.where(ok, tap, 0.0)

    # ---- one consolidated MXU matmul: (Cout, 9*C) @ (9*C, HW) ----
    return jnp.dot(w_ref[...], col_ref[...], preferred_element_type=jnp.float32)


# ----------------------------------------------------------------------------- #
# Stage kernels
# ----------------------------------------------------------------------------- #
def _stage1_kernel(x_ref, p_ref, g_ref, b_ref, w_ref, bias_ref, t_ref, wt_ref, bt_ref,
                   o_ref, col_ref, *, H, W, groups, eps, roll_matches):
    acc = _gn_swish_conv3x3(x_ref[0].astype(jnp.float32), p_ref, g_ref, b_ref, w_ref,
                            col_ref, H=H, W=W, groups=groups, eps=eps,
                            roll_matches=roll_matches)                     # (Cout, HW)
    st = t_ref[0].astype(jnp.float32)                                      # (Tc, 1)
    st = st * jax.nn.sigmoid(st)                                           # swish(t)
    temb = jnp.dot(wt_ref[...], st, preferred_element_type=jnp.float32) + bt_ref[...]
    o_ref[0] = (acc + bias_ref[...] + temb).astype(o_ref.dtype)


def _stage2_kernel(h_ref, p_ref, g_ref, b_ref, w_ref, bias_ref, xs_ref, ws_ref, bs_ref,
                   o_ref, col_ref, *, H, W, groups, eps, roll_matches):
    # TODO(synk): nn.Dropout treated as identity (eval mode); training would mask the
    #             normalized activation with pltpu.prng_seed / prng_random_bits here.
    acc = _gn_swish_conv3x3(h_ref[0].astype(jnp.float32), p_ref, g_ref, b_ref, w_ref,
                            col_ref, H=H, W=W, groups=groups, eps=eps,
                            roll_matches=roll_matches)                     # (Cout, HW)
    skip = jnp.dot(ws_ref[...], xs_ref[0].astype(jnp.float32),
                   preferred_element_type=jnp.float32) + bs_ref[...]       # 1x1 conv skip
    o_ref[0] = (acc + bias_ref[...] + skip).astype(o_ref.dtype)


# ----------------------------------------------------------------------------- #
# Wrapper
# ----------------------------------------------------------------------------- #
def _group_matrix(C, G):
    """(C, C) group-membership matrix: P[i, j] = 1 iff channels i, j share a GN group."""
    g = jnp.arange(C) // (C // G)
    return (g[:, None] == g[None, :]).astype(jnp.float32)


def residual_forward(x_nchw, t, p, groups, eps=1e-5):
    """Pallas implementation of Residual.forward. x: (N, Cin, H, W) NCHW, t: (N, Tc)."""
    N, Cin, H, W = x_nchw.shape
    Cout = p["w2"].shape[-1]
    Tc = t.shape[1]
    HW = H * W
    roll_matches = _roll_matches_jnp()   # must be evaluated outside jit (eager probe)

    x_flat = x_nchw.reshape(N, Cin, HW)  # free reshape: lanes = H*W (lane-dense)
    t_col = t[:, :, None]                # (N, Tc, 1)

    # Tiny one-time parameter re-layouts: im2col weight matrices (Cout, 9*Cin) and
    # per-channel vectors as columns so they broadcast over the lane (spatial) dim.
    P1, P2 = _group_matrix(Cin, groups), _group_matrix(Cout, groups)
    w1 = p["w1"].reshape(9 * Cin, Cout).T
    w2 = p["w2"].reshape(9 * Cout, Cout).T
    g1, b1 = p["g1"].reshape(Cin, 1), p["b1"].reshape(Cin, 1)
    g2, b2 = p["g2"].reshape(Cout, 1), p["b2"].reshape(Cout, 1)
    bias1, bias2 = p["bias1"].reshape(Cout, 1), p["bias2"].reshape(Cout, 1)
    wtT, btT = p["wt"].T, p["bt"].reshape(Cout, 1)
    wsT, bsT = p["ws"].T, p["bs"].reshape(Cout, 1)   # identity skip would be ws=I, bs=0

    const = lambda *shape: pl.BlockSpec(shape, lambda i: (0,) * len(shape))
    img = lambda c: pl.BlockSpec((1, c, HW), lambda i: (i, 0, 0))

    k1 = functools.partial(_stage1_kernel, H=H, W=W, groups=groups, eps=eps,
                           roll_matches=roll_matches)
    h1 = pl.pallas_call(
        k1,
        out_shape=jax.ShapeDtypeStruct((N, Cout, HW), x_nchw.dtype),
        grid=(N,),
        in_specs=[img(Cin), const(Cin, Cin), const(Cin, 1), const(Cin, 1),
                  const(Cout, 9 * Cin), const(Cout, 1),
                  pl.BlockSpec((1, Tc, 1), lambda i: (i, 0, 0)),
                  const(Cout, Tc), const(Cout, 1)],
        out_specs=img(Cout),
        scratch_shapes=[pltpu.VMEM((9 * Cin, HW), jnp.float32)],
        compiler_params=pltpu.CompilerParams(dimension_semantics=("parallel",)),
    )(x_flat, P1, g1, b1, w1, bias1, t_col, wtT, btT)

    k2 = functools.partial(_stage2_kernel, H=H, W=W, groups=groups, eps=eps,
                           roll_matches=roll_matches)
    out = pl.pallas_call(
        k2,
        out_shape=jax.ShapeDtypeStruct((N, Cout, HW), x_nchw.dtype),
        grid=(N,),
        in_specs=[img(Cout), const(Cout, Cout), const(Cout, 1), const(Cout, 1),
                  const(Cout, 9 * Cout), const(Cout, 1),
                  img(Cin), const(Cout, Cin), const(Cout, 1)],
        out_specs=img(Cout),
        scratch_shapes=[pltpu.VMEM((9 * Cout, HW), jnp.float32)],
        compiler_params=pltpu.CompilerParams(dimension_semantics=("parallel",)),
    )(h1, P2, g2, b2, w2, bias2, x_flat, wsT, bsT)

    return out.reshape(N, Cout, H, W)    # already NCHW


# ----------------------------------------------------------------------------- #
# Pure-JAX reference (for verification)
# ----------------------------------------------------------------------------- #
def _reference(x, t, p, groups):
    def swish(v):
        return v * jax.nn.sigmoid(v)

    def gn(v, gamma, beta):
        N, C, H, W = v.shape
        vg = v.reshape(N, groups, -1)
        mean = vg.mean(-1, keepdims=True)
        var = vg.var(-1, keepdims=True)
        vg = (vg - mean) / jnp.sqrt(var + 1e-5)
        v = vg.reshape(N, C, H, W)
        return v * gamma[0][None, :, None, None] + beta[0][None, :, None, None]

    def conv(v, w_hwio, b, pad):
        w_oihw = jnp.transpose(w_hwio, (3, 2, 0, 1))
        y = jax.lax.conv_general_dilated(
            v, w_oihw, (1, 1), [(pad, pad), (pad, pad)],
            dimension_numbers=("NCHW", "OIHW", "NCHW"))
        return y + b[0][None, :, None, None]

    y = conv(swish(gn(x, p["g1"], p["b1"])), p["w1"], p["bias1"], 1)
    temb = swish(t) @ p["wt"] + p["bt"][0]
    y = y + temb[:, :, None, None]
    y = conv(swish(gn(y, p["g2"], p["b2"])), p["w2"], p["bias2"], 1)
    skip = jnp.einsum("nchw,cd->ndhw", x, p["ws"]) + p["bs"][0][None, :, None, None]
    return y + skip


# ----------------------------------------------------------------------------- #
# Main
# ----------------------------------------------------------------------------- #
if __name__ == "__main__":
    N, Cin, Cout, Tc, G, H, W = 2, 8, 16, 32, 4, 16, 16

    key = jax.random.PRNGKey(0)
    ks = jax.random.split(key, 16)
    f32 = jnp.float32

    params = {
        "g1": jax.random.normal(ks[0], (1, Cin), f32) * 0.2 + 1.0,
        "b1": jax.random.normal(ks[1], (1, Cin), f32) * 0.1,
        "w1": jax.random.normal(ks[2], (3, 3, Cin, Cout), f32) * 0.1,   # (kh, kw, Cin, Cout)
        "bias1": jax.random.normal(ks[3], (1, Cout), f32) * 0.1,
        "wt": jax.random.normal(ks[4], (Tc, Cout), f32) * 0.1,          # Linear weight^T
        "bt": jax.random.normal(ks[5], (1, Cout), f32) * 0.1,
        "g2": jax.random.normal(ks[6], (1, Cout), f32) * 0.2 + 1.0,
        "b2": jax.random.normal(ks[7], (1, Cout), f32) * 0.1,
        "w2": jax.random.normal(ks[8], (3, 3, Cout, Cout), f32) * 0.1,
        "bias2": jax.random.normal(ks[9], (1, Cout), f32) * 0.1,
        "ws": jax.random.normal(ks[10], (Cin, Cout), f32) * 0.1,        # 1x1 skip conv
        "bs": jax.random.normal(ks[11], (1, Cout), f32) * 0.1,
    }

    x = jax.random.normal(ks[12], (N, Cin, H, W), f32)
    t = jax.random.normal(ks[13], (N, Tc), f32)

    out = residual_forward(x, t, params, groups=G)
    out = jax.block_until_ready(out)

    ref = _reference(x, t, params, G)
    assert out.shape == (N, Cout, H, W), out.shape
    err = float(jnp.max(jnp.abs(out - ref)))
    assert jnp.allclose(out, ref, atol=2e-3, rtol=2e-3), err

    print("KERNEL_OK")
</pallas_src>

<mosaic_0001>
module attributes {stable_mosaic.version = 11 : i64} {
  func.func @k(%arg0: memref<8x128xf32, #tpu.memory_space<vmem>>, %arg1: memref<8x128xf32, #tpu.memory_space<vmem>>) attributes {dimension_semantics = [], scalar_prefetch = 0 : i64, scratch_operands = 0 : i64, tpu.core_type = #tpu.core_type<tc>} {
    %c0 = arith.constant 0 : index
    %c0_0 = arith.constant 0 : index
    %0 = vector.load %arg0[%c0, %c0_0] : memref<8x128xf32, #tpu.memory_space<vmem>>, vector<8x128xf32>
    %c1_i32 = arith.constant 1 : i32
    %1 = tpu.dynamic_rotate %0 by %c1_i32 dim 1 : vector<8x128xf32>, i32 -> vector<8x128xf32>
    %c0_1 = arith.constant 0 : index
    %c0_2 = arith.constant 0 : index
    %2 = vector.load %arg1[%c0_1, %c0_2] : memref<8x128xf32, #tpu.memory_space<vmem>>, vector<8x128xf32>
    tpu.vector_store %arg1[%c0_1, %c0_2], %1 {strides = array<i32>} : memref<8x128xf32, #tpu.memory_space<vmem>>, vector<8x128xf32>,
    return
  }
}

</mosaic_0001>

<llo_original>
// kernel: tpu_custom_call.1
$region0: #{tpu_custom_call.1}
  #allocation0 [shape = 'u32[]', space=smem, size = 0x4, offset = 0x4, fixed_abs, tag = 'smem constant byte address 0x4 - core index']
  #allocation1 [shape = 'u32[144,128]{1,0:T(1,128)}', space=vmem, size = 0x12000, scoped, tag = 'internal scratch']
  %s0 = inlined_call_operand.hbm [shape: f32[8,128], index: 0, kind: input, shape index: {}]
  %s1 = inlined_call_operand.hbm [shape: f32[8,128], index: 1, kind: output, shape index: {}]
  %s2 = sld [smem:[#allocation0]]
  $region18: #{tpu_custom_call.1} parent=0
    _
  %s4 = ssub.s32 1, %s2
  %s5 = scalar_select 0, %s4, %s2
  $region1: #{tpu_custom_call.1} parent=0
    #allocation2 [shape = 'u8[4096]{0}', space=vmem, size = 0x1000, scoped, tag = 'input window, operand 0, single buffered']
    #allocation3 [shape = 's32[1]{0}', space=sflag, size = 0x4, scoped, tag = 'scoped memory for tpu_custom_call.1']
    #allocation4 [shape = 's32[1]{0}', space=sflag, size = 0x4, scoped, tag = 'scoped memory for tpu_custom_call.1']
    #allocation5 [shape = 'u8[4096]{0}', space=vmem, size = 0x1000, scoped, tag = 'output window, operand 0, single buffered']
    %6 = vsyncpa [#allocation3], 0
    %7 = vsyncpa [#allocation4], 0
    // Predicated region
    $region2: #{tpu_custom_call.1} parent=1 // pred_check
      _
    $region3: #{tpu_custom_call.1} parent=1 // pred_check_branch
      %9 = sbr.rel (0) target = $region5
    $region4: #{tpu_custom_call.1} parent=1 // pred_region
      %s11 = ssub.s32 128, 128
      %12 = vsyncadd [#allocation3], %s11
      %s14 = sshll.u32 [#allocation2], 4
      %s15 = int_to_ptr.vmem [resolvable:$true] %s14
      %17 = dma.hbm_to_vmem [thread:$0]  %s0, 128, %s15, [#allocation3]
    $region5: #{tpu_custom_call.1} parent=1 // pred_fallthru
      _
    // Predicated region
    $region6: #{tpu_custom_call.1} parent=1 // pred_check
      _
    $region7: #{tpu_custom_call.1} parent=1 // pred_check_branch
      %19 = sbr.rel (0) target = $region9
    $region8: #{tpu_custom_call.1} parent=1 // pred_region
      %20 = dma.done [#allocation3], 128
    $region9: #{tpu_custom_call.1} parent=1 // pred_fallthru
      _
    %v21 = vld [vmem:[#allocation2] sm:$0xff]
    %22 = vrot.lane.b32.xlu0 %v21, 1
    %v23 = vpop.permute.xlu0 %22
    %24 = vst [vmem:[#allocation5] sm:$0xff] %v23
    // Predicated region
    $region10: #{tpu_custom_call.1} parent=1 // pred_check
      _
    $region11: #{tpu_custom_call.1} parent=1 // pred_check_branch
      %26 = sbr.rel (0) target = $region13
    $region12: #{tpu_custom_call.1} parent=1 // pred_region
      %s28 = ssub.s32 128, 128
      %29 = vsyncadd [#allocation4], %s28
      %s31 = sshll.u32 [#allocation5], 4
      %s32 = int_to_ptr.vmem [resolvable:$true] %s31
      %34 = dma.vmem_to_hbm [thread:$0]  %s32, 128, %s1, [#allocation4]
    $region13: #{tpu_custom_call.1} parent=1 // pred_fallthru
      _
    // Predicated region
    $region14: #{tpu_custom_call.1} parent=1 // pred_check
      _
    $region15: #{tpu_custom_call.1} parent=1 // pred_check_branch
      %36 = sbr.rel (0) target = $region17
    $region16: #{tpu_custom_call.1} parent=1 // pred_region
      %37 = dma.done [#allocation4], 128
    $region17: #{tpu_custom_call.1} parent=1 // pred_fallthru
      _
    %38 = vsyncpa [#allocation3], 1
    %39 = vsyncpa [#allocation4], 1

</llo_original>
